<compile_context>
chip_gen: v5e
topology: v5e:2x2
jax: 0.10.0
libtpu: 0.0.40
codegen_flags: <defaults>
</compile_context>

<pallas_src>
import jax
import jax.numpy as jnp
from jax.experimental import pallas as pl
from jax.experimental.pallas import tpu as pltpu


_VMEM_BUDGET = 12 * 1024 * 1024      # per-step working-set target (under v5e's 16 MiB scoped default)
_OUT_BLOCK_TARGET = 2 * 1024 * 1024  # ~2 MiB of output per grid step (near the HBM roofline)


# ----------------------------------------------------------------------------
# Pallas kernel
# ----------------------------------------------------------------------------

def _nearest_upsample_kernel(x_ref, e_ref, o_ref):
    # One-hot "gather" matmul: out[t, c] = sum_k x[t, k] * E[k, c] == x[t, k_of(c)].
    # E is 0/1 so the copy is exact (f32 accumulation; Mosaic's f32 matmul uses full-precision
    # passes and bf16 operands are MXU-native), hence no precision override is required.
    x = x_ref[...].astype(e_ref.dtype)
    o_ref[...] = jnp.dot(
        x, e_ref[...], preferred_element_type=jnp.float32
    ).astype(o_ref.dtype)


# ----------------------------------------------------------------------------
# Static (wrapper-side) helpers
# ----------------------------------------------------------------------------

def _pick_lane_pack(h, w, s):
    """Choose g = input rows packed per kernel row.  Returns (g, k_in, l_out)."""
    # Valid packings: g | H (packed rows never straddle an (n, c) image plane), giving
    #   k_in = g*W input elements  ->  l_out = g*s*s*W output elements per packed row.
    cands = [(g, g * w, g * s * s * w) for g in range(1, h + 1) if h % g == 0]
    # Lane-dense output first: prefer L_out % 128 == 0 (full unmasked stores), and >= 128.
    pool = [c for c in cands if c[2] % 128 == 0] or cands
    pool = [c for c in pool if c[2] >= 128] or pool
    # Target K ~ 128 (one native MXU K-group) => L_out ~ 128*s^2: keeps the copy matmul a
    # small fraction of the HBM time on all generations while keeping P large for tiling.
    target_l = 128 * s * s
    return min(pool, key=lambda c: abs(c[2] - target_l))


def _pack_dup_matrix(w, s, g, dtype):
    """Static 0/1 matrix E' (g*w, g*s*s*w) with (x @ E')[t, c] == x[t, k_of(c)], realising
    nearest-neighbour duplication of both rows and columns inside one packed lane row."""
    k_in = g * w
    l_out = g * s * s * w
    c = jnp.arange(l_out)
    out_row = c // (s * w)                         # local output row   in [0, g*s)
    out_col = c % (s * w)                          # local output col   in [0, s*w)
    k_of_c = (out_row // s) * w + (out_col // s)   # local input offset in [0, g*w)
    return (jnp.arange(k_in)[:, None] == k_of_c[None, :]).astype(dtype)


def _pick_row_block(p, l_out, itemsize, target_bytes):
    """Packed rows per grid step: a multiple of the native sublane pack (or full P), sized by
    output-block bytes, preferring >= 4 (else >= 2) grid steps for megacore + pipelining."""
    sub = max(8, 32 // itemsize)          # f32 -> 8, bf16/f16 -> 16, int8 -> 32 sublane pack
    if p % sub != 0:
        return p                          # full-dim block is always legal
    max_rows = max(sub, int(target_bytes) // (l_out * itemsize))
    cands = [d for d in range(sub, min(p, max_rows) + 1, sub) if p % d == 0]
    if not cands:
        return sub
    for min_steps in (4, 2, 1):
        pool = [d for d in cands if p // d >= min_steps]
        if pool:
            return max(pool)
    return max(cands)


# ----------------------------------------------------------------------------
# Public op + module-like wrapper
# ----------------------------------------------------------------------------

def interpolate(x, scale_factor, mode="nearest"):
    """Pallas TPU equivalent of F.interpolate(x, scale_factor, mode) for NCHW input."""
    if mode != "nearest":
        # TODO(synk): bilinear/bicubic modes (separable weight matrices) not implemented.
        raise NotImplementedError(f"mode={mode!r} not implemented (only 'nearest')")
    s = int(round(float(scale_factor)))
    if s < 1 or float(scale_factor) != float(s):
        # TODO(synk): non-integer / per-axis scale factors not implemented.
        raise NotImplementedError("only positive integer scale factors are supported")
    if x.ndim != 4:
        # TODO(synk): 3-D (NCL) and 5-D (NCDHW) inputs not implemented.
        raise NotImplementedError("only NCHW (4-D) inputs are supported")
    if s == 1:
        return x

    n, c, h, w = x.shape
    x_dtype = x.dtype
    x_itemsize = jnp.dtype(x_dtype).itemsize
    # Keep the wire dtype native; do the 0/1 matmul in bf16 for bf16 inputs (MXU-native, exact
    # for copies) and in f32 for everything else.
    compute_dtype = jnp.bfloat16 if x_dtype == jnp.bfloat16 else jnp.float32

    g, k_in, l_out = _pick_lane_pack(h, w, s)
    p = (n * c * h) // g                  # packed rows (g | h, so rows stay inside one plane)

    # Contiguity-preserving flat views: packed input row p = g whole input rows of one (n, c)
    # plane; the matching packed output row p = g*s whole output rows of the same plane.
    x2 = x.reshape(p, k_in)
    e = _pack_dup_matrix(w, s, g, compute_dtype)

    # Size the row tile by bytes: ~2 MiB of lane-dense output per grid step while the whole
    # double-buffered working set stays inside a conservative 12 MiB VMEM budget.
    e_bytes = k_in * l_out * jnp.dtype(compute_dtype).itemsize
    per_row_bytes = 2.0 * l_out * x_itemsize * (1.0 + 1.0 / (s * s))   # 2x (out + in) per row
    avail = _VMEM_BUDGET - 2 * e_bytes
    if avail > per_row_bytes * 8:
        target_bytes = min(_OUT_BLOCK_TARGET, int(avail / per_row_bytes) * l_out * x_itemsize)
    else:
        target_bytes = 8 * l_out * x_itemsize      # one-hot dominates; use a minimal row tile
    t = _pick_row_block(p, l_out, x_itemsize, target_bytes)

    need = 2 * (t * l_out * x_itemsize + t * k_in * x_itemsize + e_bytes)
    cparams = dict(dimension_semantics=("parallel",))
    if need > _VMEM_BUDGET:
        # Unusually large one-hot (very wide feature maps): raise the scoped-VMEM limit with
        # headroom, capped safely below v7x's 64 MiB physical VMEM.
        cparams["vmem_limit_bytes"] = int(min(48 * 1024 * 1024, 2 * need))

    out2 = pl.pallas_call(
        _nearest_upsample_kernel,
        out_shape=jax.ShapeDtypeStruct((p, l_out), x_dtype),
        grid_spec=pltpu.PrefetchScalarGridSpec(
            num_scalar_prefetch=0,
            grid=(p // t,),
            in_specs=[
                pl.BlockSpec((t, k_in), lambda i: (i, 0)),
                # One-hot stays VMEM-resident across steps (constant index_map).
                pl.BlockSpec((k_in, l_out), lambda i: (0, 0)),
            ],
            out_specs=pl.BlockSpec((t, l_out), lambda i: (i, 0)),
        ),
        compiler_params=pltpu.CompilerParams(**cparams),
    )(x2, e)

    return out2.reshape(n, c, s * h, s * w)


class Interpolate:
    """Pallas TPU port of IntroVAE's `Interpolate` nn.Module wrapper."""

    def __init__(self, scale_factor, mode):
        self.scale_factor = scale_factor
        self.mode = mode

    def __call__(self, x):
        return interpolate(x, self.scale_factor, self.mode)


# ----------------------------------------------------------------------------
# Main
# ----------------------------------------------------------------------------

if __name__ == "__main__":
    key = jax.random.PRNGKey(0)
    batch, channels, height, width = 2, 4, 16, 16
    scale_factor, mode = 2, "nearest"            # IntroVAE decoder configuration

    x = jax.random.normal(key, (batch, channels, height, width), jnp.float32)

    interp = Interpolate(scale_factor=scale_factor, mode=mode)
    fwd = jax.jit(lambda t: interp(t))

    y = fwd(x)
    jax.block_until_ready(y)

    assert y.shape == (batch, channels, scale_factor * height, scale_factor * width), y.shape
    assert y.dtype == x.dtype, y.dtype
    ref = jnp.repeat(jnp.repeat(x, scale_factor, axis=2), scale_factor, axis=3)
    max_err = float(jnp.max(jnp.abs(y - ref)))
    assert jnp.allclose(y, ref, atol=1e-5, rtol=1e-5), max_err

    # Native-dtype path: bf16 stays bf16 on the wire and the copies are bit-exact.
    xb = x.astype(jnp.bfloat16)
    yb = jax.jit(lambda t: interp(t))(xb)
    jax.block_until_ready(yb)
    refb = jnp.repeat(jnp.repeat(xb, scale_factor, axis=2), scale_factor, axis=3)
    assert yb.dtype == jnp.bfloat16, yb.dtype
    assert bool(jnp.array_equal(yb, refb))

    print("KERNEL_OK")
</pallas_src>

<mosaic_0001>
module attributes {stable_mosaic.version = 11 : i64} {
  func.func @_nearest_upsample_kernel(%arg0: i32, %arg1: memref<8x128xf32, #tpu.memory_space<vmem>>, %arg2: memref<128x512xf32, #tpu.memory_space<vmem>>, %arg3: memref<8x512xf32, #tpu.memory_space<vmem>>) attributes {dimension_semantics = [#tpu.dimension_semantics<parallel>], iteration_bounds = array<i64: 2>, scalar_prefetch = 0 : i64, scratch_operands = 0 : i64, tpu.core_type = #tpu.core_type<tc>, window_params = [{transform_indices = @transform_0, window_bounds = array<i64: 8, 128>}, {pipeline_mode = #tpu.pipeline_mode<synchronous>, transform_indices = @transform_1, window_bounds = array<i64: 128, 512>}, {transform_indices = @transform_2, window_bounds = array<i64: 8, 512>}]} {
    %c0 = arith.constant 0 : index
    %c0_0 = arith.constant 0 : index
    %0 = vector.load %arg1[%c0, %c0_0] : memref<8x128xf32, #tpu.memory_space<vmem>>, vector<8x128xf32>
    %c0_1 = arith.constant 0 : index
    %c0_2 = arith.constant 0 : index
    %1 = vector.load %arg2[%c0_1, %c0_2] : memref<128x512xf32, #tpu.memory_space<vmem>>, vector<128x512xf32>
    %cst = arith.constant dense<0.000000e+00> : vector<8x512xf32>
    %2 = tpu.matmul %0, %1, %cst {dimension_numbers = #tpu.dot_dimension_numbers<[1], [0], [0], [1], [0, 0, 1, 1], [], []>} : vector<8x128xf32>, vector<128x512xf32>, vector<8x512xf32> -> vector<8x512xf32>
    %c0_3 = arith.constant 0 : index
    %c0_4 = arith.constant 0 : index
    %3 = vector.load %arg3[%c0_3, %c0_4] : memref<8x512xf32, #tpu.memory_space<vmem>>, vector<8x512xf32>
    tpu.vector_store %arg3[%c0_3, %c0_4], %2 {strides = array<i32>} : memref<8x512xf32, #tpu.memory_space<vmem>>, vector<8x512xf32>,
    return
  }
  func.func @transform_0(%arg0: i32) -> (i32, i32) {
    %c0_i32 = arith.constant 0 : i32
    %c0_i32_0 = arith.constant 0 : i32
    return %arg0, %c0_i32 : i32, i32
  }
  func.func @transform_1(%arg0: i32) -> (i32, i32) {
    %c0_i32 = arith.constant 0 : i32
    %c0_i32_0 = arith.constant 0 : i32
    %c0_i32_1 = arith.constant 0 : i32
    return %c0_i32, %c0_i32_0 : i32, i32
  }
  func.func @transform_2(%arg0: i32) -> (i32, i32) {
    %c0_i32 = arith.constant 0 : i32
    %c0_i32_0 = arith.constant 0 : i32
    return %arg0, %c0_i32 : i32, i32
  }
}

</mosaic_0001>

<llo_original>
// kernel: _lambda_.1
$region0: #{_lambda_.1}
  #allocation0 [shape = 'u32[]', space=smem, size = 0x4, offset = 0x4, fixed_abs, tag = 'smem constant byte address 0x4 - core index']
  #allocation1 [shape = 'u32[72,128]{1,0:T(1,128)}', space=vmem, size = 0x9000, scoped, tag = 'internal scratch']
  %s0 = inlined_call_operand.vmem [shape: f32[16,128], index: 0, kind: input, shape index: {}]
  %s1 = inlined_call_operand.vmem [shape: f32[128,512], index: 1, kind: input, shape index: {}]
  %s2 = inlined_call_operand.vmem [shape: f32[16,512], index: 2, kind: output, shape index: {}]
  %s3 = sld [smem:[#allocation0]]
  $region41: #{_lambda_.1} parent=0
    _
  %s5 = ssub.s32 1, %s3
  %s6 = scalar_select 0, %s5, %s3
  loop: start=0, step=1, limit=4
  $region2: #{_lambda_.1} parent=0 // loop_pre_header
    _
  $region3: #{_lambda_.1} parent=0 // loop_header
    %s8 = sphi 0, %s12
    %p9 = scmp.ge.s32.totalorder %s8, 4
    %s18 = sphi 0, %s20
    %s21 = sphi 0, %s18
    %s22 = sphi 0, %s21
    %s38 = sphi 0, %s22
    %s42 = sphi 0, %s42
    %s44 = sphi 0, %s42
    %s45 = sphi 0, %s44
    %s59 = sphi 0, %s45
    %s65 = sphi 0, %s67
    %s68 = sphi 0, %s65
    %s69 = sphi 0, %s68
    %s85 = sphi 0, %s69
  $region4: #{_lambda_.1} parent=0 // loop_header_branch
    %11 = sbr.rel (%p9) target = $region8
  $region5: #{_lambda_.1} parent=0 // loop_body
    %s13 = ssub.s32 %s8, 1
    %s14 = ssub.s32 %s8, 2
    %s15 = sadd.s32 %s8, 1
    %s16 = ssub.s32 %s8, %s15
    %p17 = scmp.eq.s32.totalorder %s16, 0
    %s19 = sadd.s32 %s18, 1
    %s20 = scalar_select %p17, %s18, %s19
    %p23 = pneg %p17
    %p24 = scmp.eq.s32.totalorder %s8, 1
    %p25 = por %p23, %p24
    %p26 = scmp.ne.s32.totalorder %s18, %s21
    %p27 = scmp.eq.s32.totalorder %s8, 0
    %p28 = por %p26, %p27
    %p29 = scmp.ne.s32.totalorder %s18, %s21
    %p30 = scmp.eq.s32.totalorder %s13, 1
    %p31 = por %p29, %p30
    %p32 = scmp.ne.s32.totalorder %s21, %s22
    %p33 = scmp.eq.s32.totalorder %s13, 0
    %p34 = por %p32, %p33
    %p35 = scmp.ne.s32.totalorder %s21, %s22
    %p36 = scmp.eq.s32.totalorder %s14, 1
    %p37 = por %p35, %p36
    %p39 = scmp.ne.s32.totalorder %s22, %s38
    %p40 = scmp.eq.s32.totalorder %s14, 0
    %p41 = por %p39, %p40
    %s43 = sadd.s32 %s42, 1
    %p46 = scmp.eq.s32.totalorder %s8, 1
    %p47 = scmp.ne.s32.totalorder %s42, %s44
    %p48 = scmp.eq.s32.totalorder %s8, 0
    %p49 = por %p47, %p48
    %p50 = scmp.ne.s32.totalorder %s42, %s44
    %p51 = scmp.eq.s32.totalorder %s13, 1
    %p52 = por %p50, %p51
    %p53 = scmp.ne.s32.totalorder %s44, %s45
    %p54 = scmp.eq.s32.totalorder %s13, 0
    %p55 = por %p53, %p54
    %p56 = scmp.ne.s32.totalorder %s44, %s45
    %p57 = scmp.eq.s32.totalorder %s14, 1
    %p58 = por %p56, %p57
    %p60 = scmp.ne.s32.totalorder %s45, %s59
    %p61 = scmp.eq.s32.totalorder %s14, 0
    %p62 = por %p60, %p61
    %s63 = ssub.s32 %s8, %s15
    %p64 = scmp.eq.s32.totalorder %s63, 0
    %s66 = sadd.s32 %s65, 1
    %s67 = scalar_select %p64, %s65, %s66
    %p70 = pneg %p64
    %p71 = scmp.eq.s32.totalorder %s8, 1
    %p72 = por %p70, %p71
    %p73 = scmp.ne.s32.totalorder %s65, %s68
    %p74 = scmp.eq.s32.totalorder %s8, 0
    %p75 = por %p73, %p74
    %p76 = scmp.ne.s32.totalorder %s65, %s68
    %p77 = scmp.eq.s32.totalorder %s13, 1
    %p78 = por %p76, %p77
    %p79 = scmp.ne.s32.totalorder %s68, %s69
    %p80 = scmp.eq.s32.totalorder %s13, 0
    %p81 = por %p79, %p80
    %p82 = scmp.ne.s32.totalorder %s68, %s69
    %p83 = scmp.eq.s32.totalorder %s14, 1
    %p84 = por %p82, %p83
    %p86 = scmp.ne.s32.totalorder %s69, %s85
    %p87 = scmp.eq.s32.totalorder %s14, 0
    %p88 = por %p86, %p87
    %p89 = scmp.le.s32.totalorder 1, %s8
    %p90 = scmp.lt.s32.totalorder %s8, 3
    %p91 = pnand %p89, %p90
    %p92 = pneg %p91
    // Predicated region
    $region9: #{_lambda_.1} parent=5 // pred_check
      _
    $region10: #{_lambda_.1} parent=5 // pred_check_branch
      %94 = sbr.rel (%p91) target = $region12
    $region11: #{_lambda_.1} parent=5 // pred_region
      %s95 = ssub.s32 %s8, 1
      // Predicated region
      $region13: #{_lambda_.1} parent=11 // pred_check
        %p96 = pneg %p55
      $region14: #{_lambda_.1} parent=11 // pred_check_branch
        %98 = sbr.rel (%p96) target = $region16
      $region15: #{_lambda_.1} parent=11 // pred_region
        _
      $region16: #{_lambda_.1} parent=11 // pred_fallthru
        _
    $region12: #{_lambda_.1} parent=5 // pred_fallthru
      _
    %p99 = scmp.lt.s32.totalorder %s8, 2
    // Predicated region
    $region17: #{_lambda_.1} parent=5 // pred_check
      %p100 = pneg %p99
    $region18: #{_lambda_.1} parent=5 // pred_check_branch
      %102 = sbr.rel (%p100) target = $region20
    $region19: #{_lambda_.1} parent=5 // pred_region
      // Predicated region
      $region21: #{_lambda_.1} parent=19 // pred_check
        %p103 = pneg %p28
      $region22: #{_lambda_.1} parent=19 // pred_check_branch
        %105 = sbr.rel (%p103) target = $region24
      $region23: #{_lambda_.1} parent=19 // pred_region
        %p106 = scmp.lt.s32.totalorder %s8, 1
        %s107 = scalar_select %p106, %s8, 1
        %s108 = smul.addr %s107, 8
        %s109 = scalar_lea.vmem %s0, %s108
      $region24: #{_lambda_.1} parent=19 // pred_fallthru
        _
    $region20: #{_lambda_.1} parent=5 // pred_fallthru
      _
    %p110 = scmp.le.s32.totalorder 1, %s8
    %p111 = scmp.lt.s32.totalorder %s8, 3
    %p112 = pnand %p110, %p111
    %p113 = pneg %p112
    // Predicated region
    $region25: #{_lambda_.1} parent=5 // pred_check
      _
    $region26: #{_lambda_.1} parent=5 // pred_check_branch
      %115 = sbr.rel (%p112) target = $region28
    $region27: #{_lambda_.1} parent=5 // pred_region
      %s116 = ssub.s32 %s8, 1
      %p117 = scmp.lt.s32.totalorder %s13, 1
      %s118 = scalar_select %p117, %s13, 1
      %s119 = smul.addr %s118, 8
      %s120 = scalar_lea.vmem %s0, %s119
      %p121 = pneg %p34
      %p122 = pneg %p31
      %p123 = pneg %p55
      %p124 = pneg %p52
      %p125 = pneg %p81
      %p126 = pneg %p78
      %p127 = scmp.lt.s32.totalorder %s13, 1
      %s128 = scalar_select %p127, %s13, 1
      %s129 = smul.addr %s128, 4
      %s130 = smul.addr %s129, 8
      %s131 = scalar_lea.vmem %s2, %s130
      %p132 = scmp.lt.s32.totalorder %s13, 1
      %s133 = scalar_select %p132, %s13, 1
      %s134 = smul.addr %s133, 8
      %s135 = scalar_lea.vmem %s0, %s134
      %p136 = scmp.lt.s32.totalorder %s13, 1
      %s137 = scalar_select %p136, %s13, 1
      %s138 = smul.addr %s137, 4
      %s139 = smul.addr %s138, 8
      %s140 = scalar_lea.vmem %s2, %s139
      %v141 = vld [vmem:[%s135] sm:$0xff]
      %v142 = vld [vmem:[%s1] sm:$0xff]
      %v143 = vld [vmem:[%s1 + $0x8] sm:$0xff]
      %v144 = vld [vmem:[%s1 + $0x10] sm:$0xff]
      %v145 = vld [vmem:[%s1 + $0x18] sm:$0xff]
      %v146 = vld [vmem:[%s1 + $0x20] sm:$0xff]
      %v147 = vld [vmem:[%s1 + $0x28] sm:$0xff]
      %v148 = vld [vmem:[%s1 + $0x30] sm:$0xff]
      %v149 = vld [vmem:[%s1 + $0x38] sm:$0xff]
      %v150 = vld [vmem:[%s1 + $0x40] sm:$0xff]
      %v151 = vld [vmem:[%s1 + $0x48] sm:$0xff]
      %v152 = vld [vmem:[%s1 + $0x50] sm:$0xff]
      %v153 = vld [vmem:[%s1 + $0x58] sm:$0xff]
      %v154 = vld [vmem:[%s1 + $0x60] sm:$0xff]
      %v155 = vld [vmem:[%s1 + $0x68] sm:$0xff]
      %v156 = vld [vmem:[%s1 + $0x70] sm:$0xff]
      %v157 = vld [vmem:[%s1 + $0x78] sm:$0xff]
      %v158 = vld [vmem:[%s1 + $0x80] sm:$0xff]
      %v159 = vld [vmem:[%s1 + $0x88] sm:$0xff]
      %v160 = vld [vmem:[%s1 + $0x90] sm:$0xff]
      %v161 = vld [vmem:[%s1 + $0x98] sm:$0xff]
      %v162 = vld [vmem:[%s1 + $0xa0] sm:$0xff]
      %v163 = vld [vmem:[%s1 + $0xa8] sm:$0xff]
      %v164 = vld [vmem:[%s1 + $0xb0] sm:$0xff]
      %v165 = vld [vmem:[%s1 + $0xb8] sm:$0xff]
      %v166 = vld [vmem:[%s1 + $0xc0] sm:$0xff]
      %v167 = vld [vmem:[%s1 + $0xc8] sm:$0xff]
      %v168 = vld [vmem:[%s1 + $0xd0] sm:$0xff]
      %v169 = vld [vmem:[%s1 + $0xd8] sm:$0xff]
      %v170 = vld [vmem:[%s1 + $0xe0] sm:$0xff]
      %v171 = vld [vmem:[%s1 + $0xe8] sm:$0xff]
      %v172 = vld [vmem:[%s1 + $0xf0] sm:$0xff]
      %v173 = vld [vmem:[%s1 + $0xf8] sm:$0xff]
      %v174 = vld [vmem:[%s1 + $0x100] sm:$0xff]
      %v175 = vld [vmem:[%s1 + $0x108] sm:$0xff]
      %v176 = vld [vmem:[%s1 + $0x110] sm:$0xff]
      %v177 = vld [vmem:[%s1 + $0x118] sm:$0xff]
      %v178 = vld [vmem:[%s1 + $0x120] sm:$0xff]
      %v179 = vld [vmem:[%s1 + $0x128] sm:$0xff]
      %v180 = vld [vmem:[%s1 + $0x130] sm:$0xff]
      %v181 = vld [vmem:[%s1 + $0x138] sm:$0xff]
      %v182 = vld [vmem:[%s1 + $0x140] sm:$0xff]
      %v183 = vld [vmem:[%s1 + $0x148] sm:$0xff]
      %v184 = vld [vmem:[%s1 + $0x150] sm:$0xff]
      %v185 = vld [vmem:[%s1 + $0x158] sm:$0xff]
      %v186 = vld [vmem:[%s1 + $0x160] sm:$0xff]
      %v187 = vld [vmem:[%s1 + $0x168] sm:$0xff]
      %v188 = vld [vmem:[%s1 + $0x170] sm:$0xff]
      %v189 = vld [vmem:[%s1 + $0x178] sm:$0xff]
      %v190 = vld [vmem:[%s1 + $0x180] sm:$0xff]
      %v191 = vld [vmem:[%s1 + $0x188] sm:$0xff]
      %v192 = vld [vmem:[%s1 + $0x190] sm:$0xff]
      %v193 = vld [vmem:[%s1 + $0x198] sm:$0xff]
      %v194 = vld [vmem:[%s1 + $0x1a0] sm:$0xff]
      %v195 = vld [vmem:[%s1 + $0x1a8] sm:$0xff]
      %v196 = vld [vmem:[%s1 + $0x1b0] sm:$0xff]
      %v197 = vld [vmem:[%s1 + $0x1b8] sm:$0xff]
      %v198 = vld [vmem:[%s1 + $0x1c0] sm:$0xff]
      %v199 = vld [vmem:[%s1 + $0x1c8] sm:$0xff]
      %v200 = vld [vmem:[%s1 + $0x1d0] sm:$0xff]
      %v201 = vld [vmem:[%s1 + $0x1d8] sm:$0xff]
      %v202 = vld [vmem:[%s1 + $0x1e0] sm:$0xff]
      %v203 = vld [vmem:[%s1 + $0x1e8] sm:$0xff]
      %v204 = vld [vmem:[%s1 + $0x1f0] sm:$0xff]
      %v205 = vld [vmem:[%s1 + $0x1f8] sm:$0xff]
      %206 = vmatpush.msra.mxu0 %v202
      %207 = vmatpush.msra.mxu0 %v198
      %208 = vmatpush.msra.mxu0 %v194
      %209 = vmatpush.msra.mxu0 %v190
      %210 = vmatpush.msra.mxu0 %v186
      %211 = vmatpush.msra.mxu0 %v182
      %212 = vmatpush.msra.mxu0 %v178
      %213 = vmatpush.msra.mxu0 %v174
      %214 = vmatpush.msra.mxu0 %v170
      %215 = vmatpush.msra.mxu0 %v166
      %216 = vmatpush.msra.mxu0 %v162
      %217 = vmatpush.msra.mxu0 %v158
      %218 = vmatpush.msra.mxu0 %v154
      %219 = vmatpush.msra.mxu0 %v150
      %220 = vmatpush.msra.mxu0 %v146
      %221 = vmatpush.msra.mxu0 %v142
      %222 = vmatmul.f32.gmra.mxu0 %v141
      %v223 = vpop.f32.mrf.mxu0
      %v224 = vadd.f32 0.0, %v223
      %225 = vdwg.mxu0
      %226 = vmatpush.msra.mxu0 %v203
      %227 = vmatpush.msra.mxu0 %v199
      %228 = vmatpush.msra.mxu0 %v195
      %229 = vmatpush.msra.mxu0 %v191
      %230 = vmatpush.msra.mxu0 %v187
      %231 = vmatpush.msra.mxu0 %v183
      %232 = vmatpush.msra.mxu0 %v179
      %233 = vmatpush.msra.mxu0 %v175
      %234 = vmatpush.msra.mxu0 %v171
      %235 = vmatpush.msra.mxu0 %v167
      %236 = vmatpush.msra.mxu0 %v163
      %237 = vmatpush.msra.mxu0 %v159
      %238 = vmatpush.msra.mxu0 %v155
      %239 = vmatpush.msra.mxu0 %v151
      %240 = vmatpush.msra.mxu0 %v147
      %241 = vmatpush.msra.mxu0 %v143
      %242 = vmatmul.f32.gmra.mxu0 %v141
      %v243 = vpop.f32.mrf.mxu0
      %v244 = vadd.f32 0.0, %v243
      %245 = vdwg.mxu0
      %246 = vmatpush.msra.mxu0 %v204
      %247 = vmatpush.msra.mxu0 %v200
      %248 = vmatpush.msra.mxu0 %v196
      %249 = vmatpush.msra.mxu0 %v192
      %250 = vmatpush.msra.mxu0 %v188
      %251 = vmatpush.msra.mxu0 %v184
      %252 = vmatpush.msra.mxu0 %v180
      %253 = vmatpush.msra.mxu0 %v176
      %254 = vmatpush.msra.mxu0 %v172
      %255 = vmatpush.msra.mxu0 %v168
      %256 = vmatpush.msra.mxu0 %v164
      %257 = vmatpush.msra.mxu0 %v160
      %258 = vmatpush.msra.mxu0 %v156
      %259 = vmatpush.msra.mxu0 %v152
      %260 = vmatpush.msra.mxu0 %v148
      %261 = vmatpush.msra.mxu0 %v144
      %262 = vmatmul.f32.gmra.mxu0 %v141
      %v263 = vpop.f32.mrf.mxu0
      %v264 = vadd.f32 0.0, %v263
      %265 = vdwg.mxu0
      %266 = vmatpush.msra.mxu0 %v205
      %267 = vmatpush.msra.mxu0 %v201
      %268 = vmatpush.msra.mxu0 %v197
      %269 = vmatpush.msra.mxu0 %v193
      %270 = vmatpush.msra.mxu0 %v189
      %271 = vmatpush.msra.mxu0 %v185
      %272 = vmatpush.msra.mxu0 %v181
      %273 = vmatpush.msra.mxu0 %v177
      %274 = vmatpush.msra.mxu0 %v173
      %275 = vmatpush.msra.mxu0 %v169
      %276 = vmatpush.msra.mxu0 %v165
      %277 = vmatpush.msra.mxu0 %v161
      %278 = vmatpush.msra.mxu0 %v157
      %279 = vmatpush.msra.mxu0 %v153
      %280 = vmatpush.msra.mxu0 %v149
      %281 = vmatpush.msra.mxu0 %v145
      %282 = vmatmul.f32.gmra.mxu0 %v141
      %v283 = vpop.f32.mrf.mxu0
      %v284 = vadd.f32 0.0, %v283
      %285 = vdwg.mxu0
      %286 = vst [vmem:[%s140] sm:$0xff] %v224
      %287 = vst [vmem:[%s140 + $0x8] sm:$0xff] %v244
      %288 = vst [vmem:[%s140 + $0x10] sm:$0xff] %v264
      %289 = vst [vmem:[%s140 + $0x18] sm:$0xff] %v284
      %p290 = scmp.lt.s32.totalorder %s13, 1
      %s291 = scalar_select %p290, %s13, 1
      %s292 = smul.addr %s291, 4
      %s293 = smul.addr %s292, 8
      %s294 = scalar_lea.vmem %s2, %s293
      // Predicated region
      $region29: #{_lambda_.1} parent=27 // pred_check
        %p295 = pneg %p78
      $region30: #{_lambda_.1} parent=27 // pred_check_branch
        %297 = sbr.rel (%p295) target = $region32
      $region31: #{_lambda_.1} parent=27 // pred_region
        _
      $region32: #{_lambda_.1} parent=27 // pred_fallthru
        _
    $region28: #{_lambda_.1} parent=5 // pred_fallthru
      _
    %p298 = scmp.le.s32.totalorder 2, %s8
    // Predicated region
    $region33: #{_lambda_.1} parent=5 // pred_check
      %p299 = pneg %p298
    $region34: #{_lambda_.1} parent=5 // pred_check_branch
      %301 = sbr.rel (%p299) target = $region36
    $region35: #{_lambda_.1} parent=5 // pred_region
      %s302 = ssub.s32 %s8, 2
      // Predicated region
      $region37: #{_lambda_.1} parent=35 // pred_check
        %p303 = pneg %p84
      $region38: #{_lambda_.1} parent=35 // pred_check_branch
        %305 = sbr.rel (%p303) target = $region40
      $region39: #{_lambda_.1} parent=35 // pred_region
        %p306 = scmp.lt.s32.totalorder %s14, 1
        %s307 = scalar_select %p306, %s14, 1
        %s308 = smul.addr %s307, 4
        %s309 = smul.addr %s308, 8
        %s310 = scalar_lea.vmem %s2, %s309
      $region40: #{_lambda_.1} parent=35 // pred_fallthru
        _
    $region36: #{_lambda_.1} parent=5 // pred_fallthru
      _
  $region6: #{_lambda_.1} parent=0 // loop_footer
    %s12 = sadd.s32 1, %s8
  $region7: #{_lambda_.1} parent=0 // loop_footer_branch
    %7 = sbr.rel target = $region3
  $region8: #{_lambda_.1} parent=0 // loop_exit
    _

</llo_original>
